<compile_context>
chip_gen: v7x
topology: tpu7x:2x2x1
jax: 0.10.0
libtpu: 0.0.40
codegen_flags: <defaults>
</compile_context>

<pallas_src>
from typing import NamedTuple

import jax
import jax.numpy as jnp
from jax.experimental import pallas as pl
from jax.experimental.pallas import tpu as pltpu


class LinDx(NamedTuple):
    """Synthetic linear dynamics x_{t+1} = A x_t + B u_t (the `dx` argument)."""
    A: jax.Array          # (n_state, n_state)
    B: jax.Array          # (n_state, n_ctrl)
    u_lower: jax.Array    # (n_ctrl,)  TODO(synk): bounds unused (unconstrained LQR)
    u_upper: jax.Array    # (n_ctrl,)


def _round_up(x, m):
    return (x + m - 1) // m * m


def _build_affine_map(A, B, cost_weight, T, ns, nc):
    """Fold the whole LQR (Riccati + linear backward pass + rollout) into one
    affine map.  Plain-JAX glue on O(6x6) matrices, T iterations.

    cost_type == 'target' semantics (matching the module): C_t = diag(w) with
    the state block zeroed for t < T-1; c_t = 0 except c_{T-1,x} = -w_x*x_tgt.

    Returns M of shape (T*ns + T*nc, 2*ns) such that, per batch column
    z = [x0; x_target] (2*ns,):
        M[:T*ns]  @ z = stacked x_t   (t = 0..T-1)
        M[T*ns:]  @ z = stacked u_t   (t = 0..T-1)
    """
    f32 = jnp.float32
    A = A.astype(f32)
    B = B.astype(f32)
    wx = cost_weight[:ns].astype(f32)
    wu = cost_weight[ns:].astype(f32)
    Cu = jnp.diag(wu)
    Cx_last = jnp.diag(wx)
    Z = jnp.zeros((ns, ns), f32)

    # ---- backward pass -------------------------------------------------------
    # Quadratic recursion -> K_t; linear recursion expressed as matrices acting
    # on x_target columns:  v_t = W_t x_tgt,  k_t = Kc_t x_tgt.
    V = Z                      # V_{t+1}
    W = Z                      # v_{t+1} coefficient on x_target (v_T = 0)
    Ks, Kc = [None] * T, [None] * T
    for t in reversed(range(T)):
        VA = V @ A
        VB = V @ B
        Qxx = A.T @ VA + (Cx_last if t == T - 1 else 0.0)
        Qxu = A.T @ VB
        Qux = B.T @ VA
        Quu = Cu + B.T @ VB
        # TODO(synk): no ridge/regularization on Quu, matching the original
        # module; requires the control cost weights to be strictly positive.
        K = -jnp.linalg.solve(Quu, Qux)            # (nc, ns)
        BtW = B.T @ W                              # qu coefficient (nc, ns)
        Kc[t] = -jnp.linalg.solve(Quu, BtW)        # k_t coefficient
        cx_coef = -Cx_last if t == T - 1 else Z    # c_{x,t} coefficient
        W = cx_coef + A.T @ W + K.T @ BtW          # v_t coefficient
        Ks[t] = K
        V = Qxx + Qxu @ K + K.T @ Qux + K.T @ (Quu @ K)

    # ---- forward rollout in coefficient space --------------------------------
    #   x_t = Px_t x0 + Pc_t x_tgt ;  u_t = K_t x_t + k_t
    Px = jnp.eye(ns, dtype=f32)
    Pc = Z
    x_rows, u_rows = [], []
    for t in range(T):
        Ux = Ks[t] @ Px
        Uc = Ks[t] @ Pc + Kc[t]
        x_rows.append(jnp.concatenate([Px, Pc], axis=1))   # (ns, 2ns)
        u_rows.append(jnp.concatenate([Ux, Uc], axis=1))   # (nc, 2ns)
        Acl = A + B @ Ks[t]
        Px, Pc = Acl @ Px, Acl @ Pc + B @ Kc[t]

    return jnp.concatenate([jnp.concatenate(x_rows, axis=0),
                            jnp.concatenate(u_rows, axis=0)], axis=0)


def _affine_gemm_kernel(M_ref, z_ref, out_ref):
    """Single lane-dense GEMM: (T*(ns+nc), 2*ns) @ (2*ns, bn) -> (rows, bn).

    Batch sits on the lane axis / MXU N dimension; all stores are full lane
    width.  This is the only compute in the kernel -- it is DMA/store bound.
    """
    out_ref[...] = jnp.dot(M_ref[...], z_ref[...],
                           preferred_element_type=jnp.float32).astype(out_ref.dtype)


class MPCPallas:
    """Pallas/TPU port of the PyTorch MPC module (cost_type='target')."""

    def __init__(self, T=6, n_state=4, n_ctrl=2, cost_weight=None,
                 cost_type="target", column_major_output=False):
        self.T = T
        self.n_state = n_state
        self.n_ctrl = n_ctrl
        if cost_weight is None:
            self.cost_weight = jnp.ones(n_state + n_ctrl, jnp.float32)
        else:
            cost_weight = jnp.asarray(cost_weight, jnp.float32).reshape(-1)
            assert cost_weight.shape[0] == n_state + n_ctrl
            self.cost_weight = cost_weight
        # TODO(synk): 'reference' cost type (per-step reference trajectory) not ported.
        assert cost_type.lower() == "target"
        self.cost_type = cost_type.lower()
        # If True, return the kernel's lane-dense (T, feature, batch) layout
        # directly and skip the HBM->HBM output transpose (perf-review rec.).
        self.column_major_output = column_major_output

    def __call__(self, dx: LinDx, x_init, x_target):
        n = x_init.shape[0]
        ns, nc, T = self.n_state, self.n_ctrl, self.T
        f32 = jnp.float32
        n_rows = T * (ns + nc)

        # Whole LQR as one tiny affine map (plain-JAX glue, batch independent).
        M = _build_affine_map(dx.A, dx.B, self.cost_weight, T, ns, nc)

        # Batch tile: lane multiple, large enough to amortize per-grid-step
        # overhead (~0.35 us), small enough that double-buffered blocks stay
        # well inside every chip's scoped-VMEM default; >= 2 grid steps when
        # the batch allows so v7x's two TensorCores both get work.
        n_pad128 = _round_up(max(n, 1), 128)
        bn = min(8192, n_pad128)
        if n_pad128 >= 256:
            bn = min(bn, _round_up(pl.cdiv(n_pad128, 2), 128))
        n_pad = _round_up(max(n, 1), bn)

        # Single (feature, batch) column input: z = [x0; x_target].
        z = jnp.zeros((2 * ns, n_pad), f32)
        z = z.at[:ns, :n].set(x_init.astype(f32).T)
        z = z.at[ns:, :n].set(x_target.astype(f32).T)

        out = pl.pallas_call(
            _affine_gemm_kernel,
            out_shape=jax.ShapeDtypeStruct((n_rows, n_pad), f32),
            grid=(n_pad // bn,),
            in_specs=[
                pl.BlockSpec((n_rows, 2 * ns), lambda i: (0, 0)),   # M (tiny, broadcast)
                pl.BlockSpec((2 * ns, bn), lambda i: (0, i)),       # [x0; x_target] columns
            ],
            out_specs=pl.BlockSpec((n_rows, bn), lambda i: (0, i)),  # merged x/u rows
            compiler_params=pltpu.CompilerParams(
                dimension_semantics=("parallel",)),
        )(M, z)

        x_col = out[:T * ns, :n].reshape(T, ns, n)
        u_col = out[T * ns:, :n].reshape(T, nc, n)
        if self.column_major_output:
            return x_col, u_col
        # Module-compatible (T, n, n_state) / (T, n, n_ctrl) layout.
        # TODO(synk): this transpose is an extra HBM shuffle of the outputs;
        # prefer column_major_output=True if downstream consumers allow it.
        return jnp.transpose(x_col, (0, 2, 1)), jnp.transpose(u_col, (0, 2, 1))


def _reference_lqr(A, B, cost_weight, x_init, x_target, T, ns, nc):
    """Pure-JAX reference: explicit per-timestep LQR backward pass + rollout."""
    f32 = jnp.float32
    A = jnp.asarray(A, f32)
    B = jnp.asarray(B, f32)
    wx = cost_weight[:ns].astype(f32)
    wu = cost_weight[ns:].astype(f32)
    Cu = jnp.diag(wu)
    Cx_last = jnp.diag(wx)
    n = x_init.shape[0]

    V = jnp.zeros((ns, ns), f32)
    v = jnp.zeros((n, ns), f32)              # row-vector convention
    Ks, ks = [None] * T, [None] * T
    for t in reversed(range(T)):
        Qxx = A.T @ V @ A + (Cx_last if t == T - 1 else 0.0)
        Qxu = A.T @ V @ B
        Qux = B.T @ V @ A
        Quu = Cu + B.T @ V @ B
        cx = -(x_target.astype(f32) * wx) if t == T - 1 else 0.0
        qx = cx + v @ A
        qu = v @ B
        Quu_inv = jnp.linalg.inv(Quu)
        K = -Quu_inv @ Qux
        k = -qu @ Quu_inv.T
        Ks[t], ks[t] = K, k
        V = Qxx + Qxu @ K + K.T @ Qux + K.T @ Quu @ K
        v = qx + qu @ K

    xs, us = [], []
    x = x_init.astype(f32)
    for t in range(T):
        u = x @ Ks[t].T + ks[t]
        xs.append(x)
        us.append(u)
        x = x @ A.T + u @ B.T
    return jnp.stack(xs), jnp.stack(us)


if __name__ == "__main__":
    T, n_state, n_ctrl, n_batch = 6, 4, 2, 2

    key = jax.random.PRNGKey(0)
    kA, kB, kx0, kxt = jax.random.split(key, 4)

    # Deterministic synthetic dynamics / inputs.
    A = jnp.eye(n_state, dtype=jnp.float32) + 0.05 * jax.random.normal(kA, (n_state, n_state))
    B = 0.1 * jax.random.normal(kB, (n_state, n_ctrl))
    dx = LinDx(A=A, B=B,
               u_lower=-10.0 * jnp.ones(n_ctrl, jnp.float32),
               u_upper=10.0 * jnp.ones(n_ctrl, jnp.float32))

    x_init = jax.random.normal(kx0, (n_batch, n_state), jnp.float32)
    x_target = jax.random.normal(kxt, (n_batch, n_state), jnp.float32)

    mpc_mod = MPCPallas(T=T, n_state=n_state, n_ctrl=n_ctrl)
    x_lqr, u_lqr = mpc_mod(dx, x_init, x_target)
    jax.block_until_ready((x_lqr, u_lqr))

    assert x_lqr.shape == (T, n_batch, n_state)
    assert u_lqr.shape == (T, n_batch, n_ctrl)
    assert bool(jnp.all(jnp.isfinite(x_lqr))) and bool(jnp.all(jnp.isfinite(u_lqr)))

    # Correctness against a plain-JAX per-timestep LQR reference.
    x_ref, u_ref = _reference_lqr(A, B, mpc_mod.cost_weight, x_init, x_target,
                                  T, n_state, n_ctrl)
    assert bool(jnp.allclose(x_lqr, x_ref, rtol=1e-3, atol=1e-3))
    assert bool(jnp.allclose(u_lqr, u_ref, rtol=1e-3, atol=1e-3))

    print("KERNEL_OK")
</pallas_src>

<mosaic_0001>
module attributes {stable_mosaic.version = 11 : i64} {
  func.func @_affine_gemm_kernel(%arg0: i32, %arg1: memref<36x8xf32, #tpu.memory_space<vmem>>, %arg2: memref<8x128xf32, #tpu.memory_space<vmem>>, %arg3: memref<36x128xf32, #tpu.memory_space<vmem>>) attributes {dimension_semantics = [#tpu.dimension_semantics<parallel>], iteration_bounds = array<i64: 1>, scalar_prefetch = 0 : i64, scratch_operands = 0 : i64, tpu.core_type = #tpu.core_type<tc>, window_params = [{pipeline_mode = #tpu.pipeline_mode<synchronous>, transform_indices = @transform_0, window_bounds = array<i64: 36, 8>}, {transform_indices = @transform_1, window_bounds = array<i64: 8, 128>}, {transform_indices = @transform_2, window_bounds = array<i64: 36, 128>}]} {
    %c0 = arith.constant 0 : index
    %c0_0 = arith.constant 0 : index
    %0 = vector.load %arg1[%c0, %c0_0] : memref<36x8xf32, #tpu.memory_space<vmem>>, vector<36x8xf32>
    %c0_1 = arith.constant 0 : index
    %c0_2 = arith.constant 0 : index
    %1 = vector.load %arg2[%c0_1, %c0_2] : memref<8x128xf32, #tpu.memory_space<vmem>>, vector<8x128xf32>
    %cst = arith.constant dense<0.000000e+00> : vector<36x128xf32>
    %2 = tpu.matmul %0, %1, %cst {dimension_numbers = #tpu.dot_dimension_numbers<[1], [0], [0], [1], [0, 0, 1, 1], [], []>} : vector<36x8xf32>, vector<8x128xf32>, vector<36x128xf32> -> vector<36x128xf32>
    %c0_3 = arith.constant 0 : index
    %c0_4 = arith.constant 0 : index
    %3 = vector.load %arg3[%c0_3, %c0_4] : memref<36x128xf32, #tpu.memory_space<vmem>>, vector<36x128xf32>
    tpu.vector_store %arg3[%c0_3, %c0_4], %2 {strides = array<i32>} : memref<36x128xf32, #tpu.memory_space<vmem>>, vector<36x128xf32>,
    return
  }
  func.func @transform_0(%arg0: i32) -> (i32, i32) {
    %c0_i32 = arith.constant 0 : i32
    %c0_i32_0 = arith.constant 0 : i32
    %c0_i32_1 = arith.constant 0 : i32
    return %c0_i32, %c0_i32_0 : i32, i32
  }
  func.func @transform_1(%arg0: i32) -> (i32, i32) {
    %c0_i32 = arith.constant 0 : i32
    %c0_i32_0 = arith.constant 0 : i32
    return %c0_i32, %arg0 : i32, i32
  }
  func.func @transform_2(%arg0: i32) -> (i32, i32) {
    %c0_i32 = arith.constant 0 : i32
    %c0_i32_0 = arith.constant 0 : i32
    return %c0_i32, %arg0 : i32, i32
  }
}

</mosaic_0001>

<llo_original>
// kernel: tpu_custom_call.1
$region0: #{tpu_custom_call.1}
  #allocation0 [shape = 'u32[]', space=smem, size = 0x4, offset = 0x4, fixed_abs, tag = 'smem constant byte address 0x4 - core index']
  #allocation1 [shape = 'u32[144,128]{1,0:T(1,128)}', space=vmem, size = 0x12000, scoped, tag = 'internal scratch']
  %s0 = inlined_call_operand.vmem [shape: f32[36,8], index: 0, kind: input, shape index: {}]
  %s1 = inlined_call_operand.vmem [shape: f32[8,128], index: 1, kind: input, shape index: {}]
  %s2 = inlined_call_operand.hbm [shape: f32[36,128], index: 2, kind: output, shape index: {}]
  %s3 = sld [smem:[#allocation0]]
  $region18: #{tpu_custom_call.1} parent=0
    _
  %s5 = ssub.s32 1, %s3
  %s6 = scalar_select 0, %s5, %s3
  $region1: #{tpu_custom_call.1} parent=0
    #allocation2 [shape = 'u8[20480]{0}', space=vmem, size = 0x5000, scoped, tag = 'output window, operand 0, single buffered']
    #allocation3 [shape = 's32[1]{0}', space=sflag, size = 0x4, scoped, tag = 'scoped memory for tpu_custom_call.1']
    %7 = vsyncpa [#allocation3], 0
    // Predicated region
    $region2: #{tpu_custom_call.1} parent=1 // pred_check
      _
    $region3: #{tpu_custom_call.1} parent=1 // pred_check_branch
      %9 = sbr.rel (0) target = $region5
    $region4: #{tpu_custom_call.1} parent=1 // pred_region
      _
    $region5: #{tpu_custom_call.1} parent=1 // pred_fallthru
      _
    // Predicated region
    $region6: #{tpu_custom_call.1} parent=1 // pred_check
      _
    $region7: #{tpu_custom_call.1} parent=1 // pred_check_branch
      %11 = sbr.rel (0) target = $region9
    $region8: #{tpu_custom_call.1} parent=1 // pred_region
      _
    $region9: #{tpu_custom_call.1} parent=1 // pred_fallthru
      _
    %v12 = vld [vmem:[%s0] sm:$0xff]
    %v13 = vld [vmem:[%s0 + $0x8] sm:$0xff]
    %v14 = vld [vmem:[%s0 + $0x10] sm:$0xff]
    %v15 = vld [vmem:[%s0 + $0x18] sm:$0xff]
    %v16 = vld [vmem:[%s0 + $0x20] sm:$0xf]
    %v17 = vld [vmem:[%s1] sm:$0xff]
    %vm18 = vcmask 64512
    %v20 = vsel %vm18, %v12, 0
    %v23 = vsel %vm18, %v13, 0
    %v26 = vsel %vm18, %v14, 0
    %v29 = vsel %vm18, %v15, 0
    %v32 = vsel %vm18, %v16, 0
    %34 = vmatprep.subr.mxu0 0.0
    %35 = vmatpush1.msra.mxu0 %v17
    %36 = vmatprep.subr.mxu0 0.0
    %37 = vmatpush1.msra.mxu0 0.0
    %38 = vmatprep.subr.mxu0 0.0
    %39 = vmatpush1.msra.mxu0 0.0
    %40 = vmatprep.subr.mxu0 0.0
    %41 = vmatpush1.msra.mxu0 0.0
    %42 = vmatprep.subr.mxu0 0.0
    %43 = vmatpush1.msra.mxu0 0.0
    %44 = vmatprep.subr.mxu0 0.0
    %45 = vmatpush1.msra.mxu0 0.0
    %46 = vmatprep.subr.mxu0 0.0
    %47 = vmatpush1.msra.mxu0 0.0
    %48 = vmatprep.subr.mxu0 0.0
    %49 = vmatpush1.msra.mxu0 0.0
    %50 = vmatprep.subr.mxu0 0.0
    %51 = vmatpush1.msra.mxu0 0.0
    %52 = vmatprep.subr.mxu0 0.0
    %53 = vmatpush1.msra.mxu0 0.0
    %54 = vmatprep.subr.mxu0 0.0
    %55 = vmatpush1.msra.mxu0 0.0
    %56 = vmatprep.subr.mxu0 0.0
    %57 = vmatpush1.msra.mxu0 0.0
    %58 = vmatprep.subr.mxu0 0.0
    %59 = vmatpush1.msra.mxu0 0.0
    %60 = vmatprep.subr.mxu0 0.0
    %61 = vmatpush1.msra.mxu0 0.0
    %62 = vmatprep.subr.mxu0 0.0
    %63 = vmatpush1.msra.mxu0 0.0
    %64 = vmatprep.subr.mxu0 0.0
    %65 = vmatpush1.msra.mxu0 0.0
    %66 = vmatprep.subr.mxu0 0.0
    %67 = vmatpush1.msra.mxu0 0.0
    %68 = vmatprep.subr.mxu0 0.0
    %69 = vmatpush1.msra.mxu0 0.0
    %70 = vmatprep.subr.mxu0 0.0
    %71 = vmatpush1.msra.mxu0 0.0
    %72 = vmatprep.subr.mxu0 0.0
    %73 = vmatpush1.msra.mxu0 0.0
    %74 = vmatprep.subr.mxu0 0.0
    %75 = vmatpush1.msra.mxu0 0.0
    %76 = vmatprep.subr.mxu0 0.0
    %77 = vmatpush1.msra.mxu0 0.0
    %78 = vmatprep.subr.mxu0 0.0
    %79 = vmatpush1.msra.mxu0 0.0
    %80 = vmatprep.subr.mxu0 0.0
    %81 = vmatpush1.msra.mxu0 0.0
    %82 = vmatprep.subr.mxu0 0.0
    %83 = vmatpush1.msra.mxu0 0.0
    %84 = vmatprep.subr.mxu0 0.0
    %85 = vmatpush1.msra.mxu0 0.0
    %86 = vmatprep.subr.mxu0 0.0
    %87 = vmatpush1.msra.mxu0 0.0
    %88 = vmatprep.subr.mxu0 0.0
    %89 = vmatpush1.msra.mxu0 0.0
    %90 = vmatprep.subr.mxu0 0.0
    %91 = vmatpush1.msra.mxu0 0.0
    %92 = vmatprep.subr.mxu0 0.0
    %93 = vmatpush1.msra.mxu0 0.0
    %94 = vmatprep.subr.mxu0 0.0
    %95 = vmatpush1.msra.mxu0 0.0
    %96 = vmatprep.subr.mxu0 0.0
    %97 = vmatpush1.msra.mxu0 0.0
    %98 = vmatprep.mubr.f32.mxu0 0.0
    %99 = vmatmul.mubr.f32.gmra.mrb[0].mxu0 %v20
    %v100 = vpop.f32.mrb[0].mxu0
    %v101 = vadd.f32 0.0, %v100
    %v102 = vpop.f32.mrb[0].mxu0
    %103 = vmatprep.mubr.f32.mxu0 0.0
    %104 = vmatmul.mubr.f32.gmra.mrb[0].mxu0 %v23
    %v105 = vpop.f32.mrb[0].mxu0
    %v106 = vadd.f32 0.0, %v105
    %v107 = vpop.f32.mrb[0].mxu0
    %108 = vmatprep.mubr.f32.mxu0 0.0
    %109 = vmatmul.mubr.f32.gmra.mrb[0].mxu0 %v26
    %v110 = vpop.f32.mrb[0].mxu0
    %v111 = vadd.f32 0.0, %v110
    %v112 = vpop.f32.mrb[0].mxu0
    %113 = vmatprep.mubr.f32.mxu0 0.0
    %114 = vmatmul.mubr.f32.gmra.mrb[0].mxu0 %v29
    %v115 = vpop.f32.mrb[0].mxu0
    %v116 = vadd.f32 0.0, %v115
    %v117 = vpop.f32.mrb[0].mxu0
    %118 = vmatprep.mubr.f32.mxu0 0.0
    %119 = vmatmul.mubr.f32.gmra.mrb[0].mxu0 %v32
    %v120 = vpop.f32.mrb[0].mxu0
    %v121 = vadd.f32 0.0, %v120
    %v122 = vpop.f32.mrb[0].mxu0
    %123 = vdwg.mxu0
    %124 = vst [vmem:[#allocation2] sm:$0xff] %v101
    %125 = vst [vmem:[#allocation2 + $0x8] sm:$0xff] %v106
    %126 = vst [vmem:[#allocation2 + $0x10] sm:$0xff] %v111
    %127 = vst [vmem:[#allocation2 + $0x18] sm:$0xff] %v116
    %128 = vst [vmem:[#allocation2 + $0x20] sm:$0xf] %v121
    // Predicated region
    $region10: #{tpu_custom_call.1} parent=1 // pred_check
      _
    $region11: #{tpu_custom_call.1} parent=1 // pred_check_branch
      %130 = sbr.rel (0) target = $region13
    $region12: #{tpu_custom_call.1} parent=1 // pred_region
      %s132 = ssub.s32 640, 640
      %133 = vsyncadd [#allocation3], %s132
      %s134 = sshll.u32 [#allocation2], 4
      %s135 = int_to_ptr.vmem [resolvable:$true] %s134
      %140 = dma.vmem_to_hbm [thread:$0]  %s135, 640, %s2, [#allocation3], 128, 128, 8
    $region13: #{tpu_custom_call.1} parent=1 // pred_fallthru
      _
    // Predicated region
    $region14: #{tpu_custom_call.1} parent=1 // pred_check
      _
    $region15: #{tpu_custom_call.1} parent=1 // pred_check_branch
      %142 = sbr.rel (0) target = $region17
    $region16: #{tpu_custom_call.1} parent=1 // pred_region
      %143 = dma.done [#allocation3], 640
    $region17: #{tpu_custom_call.1} parent=1 // pred_fallthru
      _
    %144 = vsyncpa [#allocation3], 1

</llo_original>
